<compile_context>
chip_gen: v5e
topology: v5e:2x2
jax: 0.10.0
libtpu: 0.0.40
codegen_flags: <defaults>
</compile_context>

<pallas_src>
import jax
import jax.numpy as jnp
from jax.experimental import pallas as pl
from jax.experimental.pallas import tpu as pltpu


def highway_kernel(x_ref, w_ref, b_ref, o_ref):
    x = x_ref[...]                                   # (TB, E)
    e = x.shape[-1]
    # One fused MXU pass: (TB, E) @ (E, 2E) -> (TB, 2E), f32 accumulate.
    y = jnp.dot(x, w_ref[...], preferred_element_type=jnp.float32)
    y = y + b_ref[...]                               # broadcast (1, 2E)
    proj = jnp.maximum(y[:, :e], 0.0)                # ReLU(proj path)
    gate = jax.nn.sigmoid(y[:, e:])                  # sigmoid(gate path)
    xf = x.astype(jnp.float32)
    out = xf + gate * (proj - xf)                    # == g*proj + (1-g)*x
    o_ref[...] = out.astype(o_ref.dtype)


def prepare_highway_params(w_proj, b_proj, w_gate, b_gate):
    """One-time parameter prep (do NOT call per forward pass).

    PyTorch convention: w_* is (E_out, E_in), so x @ w.T.  We pre-transpose and
    concatenate along the output dim so the kernel does a single x @ (E, 2E).
    Columns [:E] are the proj path, [E:] the gate path.
    """
    e = w_proj.shape[0]
    w_cat = jnp.concatenate([w_proj.T, w_gate.T], axis=1)        # (E, 2E)
    b_cat = jnp.concatenate([b_proj, b_gate]).reshape(1, 2 * e)  # (1, 2E)
    return w_cat, b_cat


def highway(x, w_cat, b_cat, *, block_b=512):
    """x: (B, E).  w_cat: (E, 2E) fused weight.  b_cat: (1, 2E) fused bias."""
    B, E = x.shape
    assert w_cat.shape == (E, 2 * E) and b_cat.shape == (1, 2 * E)

    # Batch tile: whole batch if it fits in one tile, else a large 8-aligned
    # tile so the x/out DMAs pipeline against the MXU work.
    tb = B if B <= block_b else block_b
    grid = (pl.cdiv(B, tb),)

    # Scoped-VMEM budget: resident fused weights + bias (double-buffered by the
    # pipeline machinery) + double-buffered x and out tiles + the (TB, 2E) f32
    # intermediate, with 2x headroom; clamp to 64 MiB (v7x physical VMEM).
    itemsize = jnp.dtype(x.dtype).itemsize
    w_bytes = w_cat.size * jnp.dtype(w_cat.dtype).itemsize + b_cat.size * 4
    io_bytes = 4 * tb * E * itemsize            # 2 bufs each for x and out
    mid_bytes = tb * 2 * E * 4                  # (TB, 2E) f32 intermediate
    vmem_limit = int(2 * (2 * w_bytes + io_bytes + mid_bytes))
    vmem_limit = min(max(vmem_limit, 16 * 1024 * 1024), 64 * 1024 * 1024)

    return pl.pallas_call(
        highway_kernel,
        out_shape=jax.ShapeDtypeStruct((B, E), x.dtype),
        grid_spec=pltpu.PrefetchScalarGridSpec(
            num_scalar_prefetch=0,
            grid=grid,
            in_specs=[
                pl.BlockSpec((tb, E), lambda i: (i, 0)),       # x: streamed
                pl.BlockSpec((E, 2 * E), lambda i: (0, 0)),    # W: resident
                pl.BlockSpec((1, 2 * E), lambda i: (0, 0)),    # b: resident
            ],
            out_specs=pl.BlockSpec((tb, E), lambda i: (i, 0)),
        ),
        compiler_params=pltpu.CompilerParams(
            dimension_semantics=("parallel",),
            vmem_limit_bytes=vmem_limit,
        ),
    )(x, w_cat, b_cat)


def highway_ref(x, w_proj, b_proj, w_gate, b_gate):
    """Pure-JAX reference matching the PyTorch forward exactly."""
    proj = jnp.maximum(x @ w_proj.T + b_proj, 0.0)
    gate = jax.nn.sigmoid(x @ w_gate.T + b_gate)
    return gate * proj + (1.0 - gate) * x


if __name__ == "__main__":
    key = jax.random.PRNGKey(0)
    batch, e_word = 8, 32

    k_x, k_wp, k_bp, k_wg, k_bg = jax.random.split(key, 5)
    x = jax.random.normal(k_x, (batch, e_word), dtype=jnp.float32)

    # Deterministic "PyTorch-like" init: uniform(-1/sqrt(E), 1/sqrt(E)).
    bound = 1.0 / (e_word ** 0.5)
    w_proj = jax.random.uniform(k_wp, (e_word, e_word), jnp.float32, -bound, bound)
    b_proj = jax.random.uniform(k_bp, (e_word,), jnp.float32, -bound, bound)
    w_gate = jax.random.uniform(k_wg, (e_word, e_word), jnp.float32, -bound, bound)
    b_gate = jax.random.uniform(k_bg, (e_word,), jnp.float32, -bound, bound)

    # One-time parameter prep (fused, pre-transposed weights).
    w_cat, b_cat = prepare_highway_params(w_proj, b_proj, w_gate, b_gate)
    w_cat, b_cat = jax.block_until_ready((w_cat, b_cat))

    out = highway(x, w_cat, b_cat)
    out = jax.block_until_ready(out)

    ref = highway_ref(x, w_proj, b_proj, w_gate, b_gate)
    assert out.shape == (batch, e_word)
    assert jnp.allclose(out, ref, atol=1e-5, rtol=1e-5), "mismatch vs reference"

    print("KERNEL_OK")
</pallas_src>

<mosaic_0001>
module attributes {stable_mosaic.version = 11 : i64} {
  func.func @highway_kernel(%arg0: i32, %arg1: memref<8x32xf32, #tpu.memory_space<vmem>>, %arg2: memref<32x64xf32, #tpu.memory_space<vmem>>, %arg3: memref<1x64xf32, #tpu.memory_space<vmem>>, %arg4: memref<8x32xf32, #tpu.memory_space<vmem>>) attributes {dimension_semantics = [#tpu.dimension_semantics<parallel>], iteration_bounds = array<i64: 1>, scalar_prefetch = 0 : i64, scratch_operands = 0 : i64, tpu.core_type = #tpu.core_type<tc>, window_params = [{transform_indices = @transform_0, window_bounds = array<i64: 8, 32>}, {pipeline_mode = #tpu.pipeline_mode<synchronous>, transform_indices = @transform_1, window_bounds = array<i64: 32, 64>}, {pipeline_mode = #tpu.pipeline_mode<synchronous>, transform_indices = @transform_2, window_bounds = array<i64: 1, 64>}, {transform_indices = @transform_3, window_bounds = array<i64: 8, 32>}]} {
    %c0 = arith.constant 0 : index
    %c0_0 = arith.constant 0 : index
    %0 = vector.load %arg1[%c0, %c0_0] : memref<8x32xf32, #tpu.memory_space<vmem>>, vector<8x32xf32>
    %c0_1 = arith.constant 0 : index
    %c0_2 = arith.constant 0 : index
    %1 = vector.load %arg2[%c0_1, %c0_2] : memref<32x64xf32, #tpu.memory_space<vmem>>, vector<32x64xf32>
    %cst = arith.constant dense<0.000000e+00> : vector<8x64xf32>
    %2 = tpu.matmul %0, %1, %cst {dimension_numbers = #tpu.dot_dimension_numbers<[1], [0], [0], [1], [0, 0, 1, 1], [], []>} : vector<8x32xf32>, vector<32x64xf32>, vector<8x64xf32> -> vector<8x64xf32>
    %c0_3 = arith.constant 0 : index
    %c0_4 = arith.constant 0 : index
    %3 = vector.load %arg3[%c0_3, %c0_4] : memref<1x64xf32, #tpu.memory_space<vmem>>, vector<1x64xf32>
    %4 = vector.broadcast %3 : vector<1x64xf32> to vector<8x64xf32>
    %5 = arith.addf %2, %4 : vector<8x64xf32>
    %6 = vector.extract_strided_slice %5 {offsets = [0, 0], sizes = [8, 32], strides = [1, 1]} : vector<8x64xf32> to vector<8x32xf32>
    %cst_5 = arith.constant 0.000000e+00 : f32
    %7 = vector.broadcast %cst_5 : f32 to vector<8x32xf32>
    %8 = arith.maximumf %6, %7 : vector<8x32xf32>
    %9 = vector.extract_strided_slice %5 {offsets = [0, 32], sizes = [8, 32], strides = [1, 1]} : vector<8x64xf32> to vector<8x32xf32>
    %10 = arith.negf %9 : vector<8x32xf32>
    %11 = math.exp %10 : vector<8x32xf32>
    %cst_6 = arith.constant 1.000000e+00 : f32
    %12 = vector.broadcast %cst_6 : f32 to vector<8x32xf32>
    %13 = arith.addf %12, %11 : vector<8x32xf32>
    %14 = arith.divf %12, %13 : vector<8x32xf32>
    %15 = arith.subf %8, %0 : vector<8x32xf32>
    %16 = arith.mulf %14, %15 : vector<8x32xf32>
    %17 = arith.addf %0, %16 : vector<8x32xf32>
    %c0_7 = arith.constant 0 : index
    %c0_8 = arith.constant 0 : index
    %18 = vector.load %arg4[%c0_7, %c0_8] : memref<8x32xf32, #tpu.memory_space<vmem>>, vector<8x32xf32>
    tpu.vector_store %arg4[%c0_7, %c0_8], %17 {strides = array<i32>} : memref<8x32xf32, #tpu.memory_space<vmem>>, vector<8x32xf32>,
    return
  }
  func.func @transform_0(%arg0: i32) -> (i32, i32) {
    %c0_i32 = arith.constant 0 : i32
    %c0_i32_0 = arith.constant 0 : i32
    return %arg0, %c0_i32 : i32, i32
  }
  func.func @transform_1(%arg0: i32) -> (i32, i32) {
    %c0_i32 = arith.constant 0 : i32
    %c0_i32_0 = arith.constant 0 : i32
    %c0_i32_1 = arith.constant 0 : i32
    return %c0_i32, %c0_i32_0 : i32, i32
  }
  func.func @transform_2(%arg0: i32) -> (i32, i32) {
    %c0_i32 = arith.constant 0 : i32
    %c0_i32_0 = arith.constant 0 : i32
    %c0_i32_1 = arith.constant 0 : i32
    return %c0_i32, %c0_i32_0 : i32, i32
  }
  func.func @transform_3(%arg0: i32) -> (i32, i32) {
    %c0_i32 = arith.constant 0 : i32
    %c0_i32_0 = arith.constant 0 : i32
    return %arg0, %c0_i32 : i32, i32
  }
}

</mosaic_0001>

<llo_original>
// kernel: tpu_custom_call.1
$region0: #{tpu_custom_call.1}
  #allocation0 [shape = 'u32[]', space=smem, size = 0x4, offset = 0x4, fixed_abs, tag = 'smem constant byte address 0x4 - core index']
  #allocation1 [shape = 'u32[72,128]{1,0:T(1,128)}', space=vmem, size = 0x9000, scoped, tag = 'internal scratch']
  %s0 = inlined_call_operand.hbm [shape: f32[8,32], index: 0, kind: input, shape index: {}]
  %s1 = inlined_call_operand.hbm [shape: f32[32,64], index: 1, kind: input, shape index: {}]
  %s2 = inlined_call_operand.vmem [shape: f32[1,64], index: 2, kind: input, shape index: {}]
  %s3 = inlined_call_operand.hbm [shape: f32[8,32], index: 3, kind: output, shape index: {}]
  %s4 = sld [smem:[#allocation0]]
  $region30: #{tpu_custom_call.1} parent=0
    _
  %s6 = ssub.s32 1, %s4
  %s7 = scalar_select 0, %s6, %s4
  $region1: #{tpu_custom_call.1} parent=0
    #allocation2 [shape = 'u8[4096]{0}', space=vmem, size = 0x1000, scoped, tag = 'input window, operand 0, single buffered']
    #allocation3 [shape = 's32[1]{0}', space=sflag, size = 0x4, scoped, tag = 'scoped memory for tpu_custom_call.1']
    #allocation4 [shape = 's32[1]{0}', space=sflag, size = 0x4, scoped, tag = 'scoped memory for tpu_custom_call.1']
    #allocation5 [shape = 'u8[16384]{0}', space=vmem, size = 0x4000, scoped, tag = 'input window, operand 1, single buffered']
    #allocation6 [shape = 's32[1]{0}', space=sflag, size = 0x4, scoped, tag = 'scoped memory for tpu_custom_call.1']
    #allocation7 [shape = 'u8[4096]{0}', space=vmem, size = 0x1000, scoped, tag = 'output window, operand 0, single buffered']
    %8 = vsyncpa [#allocation3], 0
    %9 = vsyncpa [#allocation6], 0
    %10 = vsyncpa [#allocation4], 0
    // Predicated region
    $region2: #{tpu_custom_call.1} parent=1 // pred_check
      _
    $region3: #{tpu_custom_call.1} parent=1 // pred_check_branch
      %12 = sbr.rel (0) target = $region5
    $region4: #{tpu_custom_call.1} parent=1 // pred_region
      %14 = vsyncadd [#allocation3], 0
      %s16 = sshll.u32 %s0, 4
      %s17 = int_to_ptr.hbm [resolvable:$true] %s16
      %s18 = sshll.u32 [#allocation2], 4
      %s19 = int_to_ptr.vmem [resolvable:$true] %s18
      %21 = dma.hbm_to_vmem [thread:$0]  %s17, 128, %s19, [#allocation3]
    $region5: #{tpu_custom_call.1} parent=1 // pred_fallthru
      _
    // Predicated region
    $region6: #{tpu_custom_call.1} parent=1 // pred_check
      _
    $region7: #{tpu_custom_call.1} parent=1 // pred_check_branch
      %23 = sbr.rel (0) target = $region9
    $region8: #{tpu_custom_call.1} parent=1 // pred_region
      %25 = vsyncadd [#allocation6], 0
      %s26 = sshll.u32 %s1, 4
      %s27 = int_to_ptr.hbm [resolvable:$true] %s26
      %s28 = sshll.u32 [#allocation5], 4
      %s29 = int_to_ptr.vmem [resolvable:$true] %s28
      %34 = dma.hbm_to_vmem [thread:$0]  %s27, 512, %s29, [#allocation6], 128, 128, 8
    $region9: #{tpu_custom_call.1} parent=1 // pred_fallthru
      _
    // Predicated region
    $region10: #{tpu_custom_call.1} parent=1 // pred_check
      _
    $region11: #{tpu_custom_call.1} parent=1 // pred_check_branch
      %36 = sbr.rel (0) target = $region13
    $region12: #{tpu_custom_call.1} parent=1 // pred_region
      _
    $region13: #{tpu_custom_call.1} parent=1 // pred_fallthru
      _
    // Predicated region
    $region14: #{tpu_custom_call.1} parent=1 // pred_check
      _
    $region15: #{tpu_custom_call.1} parent=1 // pred_check_branch
      %38 = sbr.rel (0) target = $region17
    $region16: #{tpu_custom_call.1} parent=1 // pred_region
      %40 = dma.done [#allocation3], 128
    $region17: #{tpu_custom_call.1} parent=1 // pred_fallthru
      _
    // Predicated region
    $region18: #{tpu_custom_call.1} parent=1 // pred_check
      _
    $region19: #{tpu_custom_call.1} parent=1 // pred_check_branch
      %42 = sbr.rel (0) target = $region21
    $region20: #{tpu_custom_call.1} parent=1 // pred_region
      %44 = dma.done [#allocation6], 512
    $region21: #{tpu_custom_call.1} parent=1 // pred_fallthru
      _
    %v45 = vld [vmem:[#allocation2] sm:$0xff]
    %v46 = vld [vmem:[#allocation5] sm:$0xff]
    %v47 = vld [vmem:[#allocation5 + $0x8] sm:$0xff]
    %v48 = vld [vmem:[#allocation5 + $0x10] sm:$0xff]
    %v49 = vld [vmem:[#allocation5 + $0x18] sm:$0xff]
    %v50 = vld [vmem:[%s2] sm:$0x1]
    %v52 = vperm.slane %v50, 0
    %vm54 = vcmask 261120
    %v56 = vsel %vm54, %v45, 0
    %58 = vmatpush.msra.mxu0 0.0
    %59 = vmatpush.msra.mxu0 0.0
    %60 = vmatpush.msra.mxu0 0.0
    %61 = vmatpush.msra.mxu0 0.0
    %62 = vmatpush.msra.mxu0 0.0
    %63 = vmatpush.msra.mxu0 0.0
    %64 = vmatpush.msra.mxu0 0.0
    %65 = vmatpush.msra.mxu0 0.0
    %66 = vmatpush.msra.mxu0 0.0
    %67 = vmatpush.msra.mxu0 0.0
    %68 = vmatpush.msra.mxu0 0.0
    %69 = vmatpush.msra.mxu0 0.0
    %70 = vmatpush.msra.mxu0 %v49
    %71 = vmatpush.msra.mxu0 %v48
    %72 = vmatpush.msra.mxu0 %v47
    %73 = vmatpush.msra.mxu0 %v46
    %74 = vmatmul.f32.gmra.mxu0 %v56
    %v75 = vpop.f32.mrf.mxu0
    %v76 = vadd.f32 %v52, %v75
    %77 = vdwg.mxu0
    %v78 = vmax.f32 %v76, 0.0
    %v79 = vxor.u32 %v76, 2147483648
    %v80 = vmul.f32 %v79, 1.442695
    %v81 = vpow.pop %v80
    %v82 = vadd.f32 %v81, 1.0
    %v83 = vrcp.pop %v82
    %v84 = vmul.f32 %v82, %v83
    %v85 = vsub.f32 1.0, %v84
    %v86 = vmul.f32 %v83, %v85
    %v87 = vadd.f32 %v83, %v86
    %vm88 = vweird.f32 %v82
    %vm89 = vweird.f32 %v83
    %vm90 = vmor %vm88, %vm89
    %v91 = vsel %vm90, %v83, %v87
    %v92 = vand.u32 2147483647, %v82
    %vm93 = vcmp.eq.f32.partialorder %v92, 8.507059e+37
    %v94 = vand.u32 %v82, 2147483648
    %v95 = vor.u32 1.1754944e-38, %v94
    %v96 = vsel %vm93, %v95, %v91
    %v97 = vmul.f32 1.0, %v96
    %v98 = vsub.f32 %v78, %v45
    %100 = vrot.lane.b32.xlu0 %v98, 32
    %v101 = vpop.permute.xlu0 %100
    %v103 = vmul.f32 %v97, %v101
    %105 = vrot.lane.b32.xlu0 %v103, 96
    %v106 = vpop.permute.xlu0 %105
    %v108 = vadd.f32 %v45, %v106
    %109 = vst.msk [vmem:[#allocation7] sm:$0xff] %vm54, %v108
    // Predicated region
    $region22: #{tpu_custom_call.1} parent=1 // pred_check
      _
    $region23: #{tpu_custom_call.1} parent=1 // pred_check_branch
      %111 = sbr.rel (0) target = $region25
    $region24: #{tpu_custom_call.1} parent=1 // pred_region
      %113 = vsyncadd [#allocation4], 0
      %s115 = sshll.u32 [#allocation7], 4
      %s116 = int_to_ptr.vmem [resolvable:$true] %s115
      %s117 = sshll.u32 %s3, 4
      %s118 = int_to_ptr.hbm [resolvable:$true] %s117
      %120 = dma.vmem_to_hbm [thread:$0]  %s116, 128, %s118, [#allocation4]
    $region25: #{tpu_custom_call.1} parent=1 // pred_fallthru
      _
    // Predicated region
    $region26: #{tpu_custom_call.1} parent=1 // pred_check
      _
    $region27: #{tpu_custom_call.1} parent=1 // pred_check_branch
      %122 = sbr.rel (0) target = $region29
    $region28: #{tpu_custom_call.1} parent=1 // pred_region
      %124 = dma.done [#allocation4], 128
    $region29: #{tpu_custom_call.1} parent=1 // pred_fallthru
      _
    %125 = vsyncpa [#allocation3], 1
    %126 = vsyncpa [#allocation6], 1
    %127 = vsyncpa [#allocation4], 1

</llo_original>
